<compile_context>
chip_gen: v7x
topology: tpu7x:2x2x1
jax: 0.10.0
libtpu: 0.0.40
codegen_flags: <defaults>
</compile_context>

<pallas_src>
import jax
import jax.numpy as jnp
from jax import lax
from jax.experimental import pallas as pl
from jax.experimental.pallas import tpu as pltpu


def _l2norm_kernel(x_ref, o_ref):
    x = x_ref[...]                                      # (row_tile, D)
    # accumulate the squared sum in f32 regardless of input dtype
    x32 = x.astype(jnp.float32)
    sq_sum = jnp.sum(x32 * x32, axis=-1, keepdims=True)  # (row_tile, 1)
    inv_norm = lax.rsqrt(sq_sum)                          # EUP rsqrt, not a vector divide
    o_ref[...] = (x32 * inv_norm).astype(o_ref.dtype)


def l2_normalize_last_dim(
    x,
    *,
    max_tile_bytes=8 * 1024 * 1024,       # per-input-tile budget (f32 bytes)
    vmem_limit_bytes=48 * 1024 * 1024,    # fits v7x's 64 MiB VMEM with headroom
):
    """X / X.norm(dim=-1, keepdim=True) computed in a Pallas TPU kernel."""
    orig_shape = x.shape
    D = orig_shape[-1]
    x2d = x.reshape(-1, D)
    n_rows = x2d.shape[0]

    # minimum sublane multiple depends on dtype packing (f32:8, bf16:16, int8/fp8:32)
    itemsize = jnp.dtype(x.dtype).itemsize
    sublane = {4: 8, 2: 16, 1: 32}.get(itemsize, 8)

    # largest row tile whose f32 working set stays inside the budget
    rows_budget = max(sublane, max_tile_bytes // (D * 4))
    rows_budget = (rows_budget // sublane) * sublane
    row_tile = int(min(rows_budget, 2048))
    if n_rows <= row_tile:
        # small input: one full-extent block (full array dim is always legal)
        row_tile = n_rows

    grid = (pl.cdiv(n_rows, row_tile),)   # ragged final block handled by Pallas

    out2d = pl.pallas_call(
        _l2norm_kernel,
        out_shape=jax.ShapeDtypeStruct((n_rows, D), x.dtype),
        grid_spec=pltpu.PrefetchScalarGridSpec(
            num_scalar_prefetch=0,
            grid=grid,
            in_specs=[pl.BlockSpec((row_tile, D), lambda i: (i, 0))],
            out_specs=pl.BlockSpec((row_tile, D), lambda i: (i, 0)),
        ),
        compiler_params=pltpu.CompilerParams(
            dimension_semantics=("parallel",),
            vmem_limit_bytes=vmem_limit_bytes,
        ),
    )(x2d)

    return out2d.reshape(orig_shape)


if __name__ == "__main__":
    key = jax.random.PRNGKey(0)
    # small (batch, seq, hidden) input consistent with the module's forward
    x = jax.random.normal(key, (2, 8, 32), dtype=jnp.float32)

    out = l2_normalize_last_dim(x)
    jax.block_until_ready(out)

    # sanity check against plain-JAX reference
    ref = x / jnp.linalg.norm(x, axis=-1, keepdims=True)
    assert out.shape == x.shape
    assert jnp.allclose(out, ref, atol=1e-5, rtol=1e-5)

    print("KERNEL_OK")
</pallas_src>

<mosaic_0001>
module attributes {stable_mosaic.version = 11 : i64} {
  func.func @_l2norm_kernel(%arg0: i32, %arg1: memref<16x32xf32, #tpu.memory_space<vmem>>, %arg2: memref<16x32xf32, #tpu.memory_space<vmem>>) attributes {dimension_semantics = [#tpu.dimension_semantics<parallel>], iteration_bounds = array<i64: 1>, scalar_prefetch = 0 : i64, scratch_operands = 0 : i64, tpu.core_type = #tpu.core_type<tc>, window_params = [{transform_indices = @transform_0, window_bounds = array<i64: 16, 32>}, {transform_indices = @transform_1, window_bounds = array<i64: 16, 32>}]} {
    %c0 = arith.constant 0 : index
    %c0_0 = arith.constant 0 : index
    %0 = vector.load %arg1[%c0, %c0_0] : memref<16x32xf32, #tpu.memory_space<vmem>>, vector<16x32xf32>
    %1 = arith.mulf %0, %0 : vector<16x32xf32>
    %cst = arith.constant dense<0.000000e+00> : vector<16xf32>
    %2 = vector.multi_reduction <add>, %1, %cst [1] : vector<16x32xf32> to vector<16xf32>
    %3 = vector.shape_cast %2 : vector<16xf32> to vector<16x1xf32>
    %4 = math.rsqrt %3 : vector<16x1xf32>
    %5 = vector.broadcast %4 : vector<16x1xf32> to vector<16x32xf32>
    %6 = arith.mulf %0, %5 : vector<16x32xf32>
    %c0_1 = arith.constant 0 : index
    %c0_2 = arith.constant 0 : index
    %7 = vector.load %arg2[%c0_1, %c0_2] : memref<16x32xf32, #tpu.memory_space<vmem>>, vector<16x32xf32>
    tpu.vector_store %arg2[%c0_1, %c0_2], %6 {strides = array<i32>} : memref<16x32xf32, #tpu.memory_space<vmem>>, vector<16x32xf32>,
    return
  }
  func.func @transform_0(%arg0: i32) -> (i32, i32) {
    %c0_i32 = arith.constant 0 : i32
    %c0_i32_0 = arith.constant 0 : i32
    return %arg0, %c0_i32 : i32, i32
  }
  func.func @transform_1(%arg0: i32) -> (i32, i32) {
    %c0_i32 = arith.constant 0 : i32
    %c0_i32_0 = arith.constant 0 : i32
    return %arg0, %c0_i32 : i32, i32
  }
}

</mosaic_0001>

<llo_original>
// kernel: tpu_custom_call.1
$region0: #{tpu_custom_call.1}
  #allocation0 [shape = 'u32[]', space=smem, size = 0x4, offset = 0x4, fixed_abs, tag = 'smem constant byte address 0x4 - core index']
  #allocation1 [shape = 'u32[144,128]{1,0:T(1,128)}', space=vmem, size = 0x12000, scoped, tag = 'internal scratch']
  %s0 = inlined_call_operand.hbm [shape: f32[16,32], index: 0, kind: input, shape index: {}]
  %s1 = inlined_call_operand.hbm [shape: f32[16,32], index: 1, kind: output, shape index: {}]
  %s2 = sld [smem:[#allocation0]]
  $region18: #{tpu_custom_call.1} parent=0
    _
  %s4 = ssub.s32 1, %s2
  %s5 = scalar_select 0, %s4, %s2
  $region1: #{tpu_custom_call.1} parent=0
    #allocation2 [shape = 'u8[8192]{0}', space=vmem, size = 0x2000, scoped, tag = 'input window, operand 0, single buffered']
    #allocation3 [shape = 's32[1]{0}', space=sflag, size = 0x4, scoped, tag = 'scoped memory for tpu_custom_call.1']
    #allocation4 [shape = 's32[1]{0}', space=sflag, size = 0x4, scoped, tag = 'scoped memory for tpu_custom_call.1']
    #allocation5 [shape = 'u8[8192]{0}', space=vmem, size = 0x2000, scoped, tag = 'output window, operand 0, single buffered']
    %6 = vsyncpa [#allocation3], 0
    %7 = vsyncpa [#allocation4], 0
    // Predicated region
    $region2: #{tpu_custom_call.1} parent=1 // pred_check
      _
    $region3: #{tpu_custom_call.1} parent=1 // pred_check_branch
      %9 = sbr.rel (0) target = $region5
    $region4: #{tpu_custom_call.1} parent=1 // pred_region
      %s11 = ssub.s32 256, 256
      %12 = vsyncadd [#allocation3], %s11
      %s13 = sshll.u32 [#allocation2], 4
      %s14 = int_to_ptr.vmem [resolvable:$true] %s13
      %19 = dma.hbm_to_vmem [thread:$0]  %s0, 256, %s14, [#allocation3], 128, 128, 8
    $region5: #{tpu_custom_call.1} parent=1 // pred_fallthru
      _
    // Predicated region
    $region6: #{tpu_custom_call.1} parent=1 // pred_check
      _
    $region7: #{tpu_custom_call.1} parent=1 // pred_check_branch
      %21 = sbr.rel (0) target = $region9
    $region8: #{tpu_custom_call.1} parent=1 // pred_region
      %22 = dma.done [#allocation3], 256
    $region9: #{tpu_custom_call.1} parent=1 // pred_fallthru
      _
    %v23 = vld [vmem:[#allocation2] sm:$0xff]
    %v24 = vld [vmem:[#allocation2 + $0x8] sm:$0xff]
    %v25 = vmul.f32 %v23, %v23
    %v26 = vmul.f32 %v24, %v24
    %vm27 = vcmask 261120
    %v28 = vsel %vm27, %v25, 0.0
    %29 = vadd.xlane.f32.xlu0 %v28
    %v30 = vpop.xlane.xlu0 %29
    %v31 = vsel %vm27, %v26, 0.0
    %32 = vadd.xlane.f32.xlu0 %v31
    %v33 = vpop.xlane.xlu0 %32
    %v34 = vrsqrt.pop %v30
    %v35 = vrsqrt.pop %v33
    %v36 = vmul.f32 %v23, %v34
    %v37 = vmul.f32 %v24, %v35
    %38 = vst.msk [vmem:[#allocation5] sm:$0xff] %vm27, %v36
    %39 = vst.msk [vmem:[#allocation5 + $0x8] sm:$0xff] %vm27, %v37
    // Predicated region
    $region10: #{tpu_custom_call.1} parent=1 // pred_check
      _
    $region11: #{tpu_custom_call.1} parent=1 // pred_check_branch
      %41 = sbr.rel (0) target = $region13
    $region12: #{tpu_custom_call.1} parent=1 // pred_region
      %s43 = ssub.s32 256, 256
      %44 = vsyncadd [#allocation4], %s43
      %s45 = sshll.u32 [#allocation5], 4
      %s46 = int_to_ptr.vmem [resolvable:$true] %s45
      %51 = dma.vmem_to_hbm [thread:$0]  %s46, 256, %s1, [#allocation4], 128, 128, 8
    $region13: #{tpu_custom_call.1} parent=1 // pred_fallthru
      _
    // Predicated region
    $region14: #{tpu_custom_call.1} parent=1 // pred_check
      _
    $region15: #{tpu_custom_call.1} parent=1 // pred_check_branch
      %53 = sbr.rel (0) target = $region17
    $region16: #{tpu_custom_call.1} parent=1 // pred_region
      %54 = dma.done [#allocation4], 256
    $region17: #{tpu_custom_call.1} parent=1 // pred_fallthru
      _
    %55 = vsyncpa [#allocation3], 1
    %56 = vsyncpa [#allocation4], 1

</llo_original>
